<compile_context>
chip_gen: v5e
topology: v5e:2x2
jax: 0.10.0
libtpu: 0.0.40
codegen_flags: <defaults>
</compile_context>

<pallas_src>
import functools
import math

import numpy as np
import jax
import jax.numpy as jnp
from jax.experimental import pallas as pl
from jax.experimental.pallas import tpu as pltpu

PAD = 32                 # each sub-table padded to 32 rows -> combined table has 128 rows
TABLE_ROWS = 4 * PAD     # 128 (= MXU contraction depth)
SIZES = (13, 32, 7, 24)  # month, day, weekday, hour  (matches x[:, :, 0..3])


def _round_up(x, m):
    return ((x + m - 1) // m) * m


def _fixed_embedding_table_np(c_in, d_model):
    """Reproduces FixedEmbedding.__init__ weight construction (host-side numpy)."""
    pos = np.arange(c_in, dtype=np.float32)[:, None]
    div = np.exp(
        np.arange(0, d_model, 2, dtype=np.float32) * -(math.log(10000.0) / d_model)
    )
    w = np.zeros((c_in, d_model), dtype=np.float32)
    w[:, 0::2] = np.sin(pos * div)
    w[:, 1::2] = np.cos(pos * div)
    return w


@functools.lru_cache(maxsize=None)
def _get_combined_table(d_model):
    """(128, d_model) f32 table: [month | day | weekday | hour], each padded to 32 rows.

    Built once per d_model on host and cached as a device array, so the table
    construction never appears in the per-call hot path.
    """
    parts = [
        np.pad(_fixed_embedding_table_np(s, d_model), ((0, PAD - s), (0, 0)))
        for s in SIZES
    ]
    return jnp.asarray(np.concatenate(parts, axis=0), dtype=jnp.float32)


def _choose_tile(n_rows, d_model, target_step_bytes, max_tile, min_steps):
    """Rows per grid step: ~target_step_bytes of output per step, multiple of 8."""
    row_bytes = d_model * 4
    t = max(128, (target_step_bytes // row_bytes) // 128 * 128)  # multiple of 128
    t = min(t, max_tile)
    t = min(t, _round_up(n_rows, 8))          # never much larger than the data
    if n_rows >= min_steps * 128:
        # Keep >= min_steps grid steps so v7x's two TensorCores both get work
        # (costs only ~0.35 us extra on the single-TC v5e/v6e).
        t = min(t, max(128, _round_up(-(-n_rows // min_steps), 128)))
    return t


def _temporal_embed_kernel(idx_ref, table_ref, out_ref):
    # idx_ref:   (tile, 4)        int32, pre-offset into the 128-row combined table
    # table_ref: (128, d_model)   float32 concatenated padded embedding tables
    # out_ref:   (tile, d_model)  float32 summed embeddings
    idx = idx_ref[...]                                           # (tile, 4)
    tn = idx.shape[0]
    cols = jax.lax.broadcasted_iota(jnp.int32, (tn, TABLE_ROWS), 1)
    # Sub-table row ranges are disjoint (indices clamped in the wrapper), so the
    # OR of the 4 compares equals the sum of 4 one-hots; one cast total.
    hit = cols == idx[:, 0:1]
    for k in range(1, 4):                                        # static unrolled
        hit = hit | (cols == idx[:, k:k + 1])
    oh = hit.astype(jnp.float32)
    out_ref[...] = jnp.dot(oh, table_ref[...], preferred_element_type=jnp.float32)


def witran_temporal_embedding(x_mark, d_model, *,
                              target_step_bytes=2 << 20,   # ~2 MiB of output per step
                              max_tile=4096,
                              min_steps=2):
    """x_mark: (B, L, 4) integer time marks -> (B, L, d_model) float32 (eval mode)."""
    B, L, C = x_mark.shape
    assert C == 4, "freq='h' expects 4 time features [month, day, weekday, hour]"
    assert d_model % 2 == 0, "sinusoidal FixedEmbedding requires even d_model"

    table = _get_combined_table(d_model)                 # (128, d_model), cached
    N = B * L

    # Flatten, clamp to valid per-feature ranges (nn.Embedding would raise on OOB;
    # clamping also keeps the one-hot row ranges disjoint), pre-add k*32 offsets.
    idx = x_mark.astype(jnp.int32).reshape(N, C)
    idx = jnp.clip(idx, 0, jnp.asarray([12, 31, 6, 23], dtype=jnp.int32))
    idx = idx + jnp.asarray([0, PAD, 2 * PAD, 3 * PAD], dtype=jnp.int32)

    tile = _choose_tile(N, d_model, target_step_bytes, max_tile, min_steps)
    grid = (pl.cdiv(N, tile),)

    out = pl.pallas_call(
        _temporal_embed_kernel,
        out_shape=jax.ShapeDtypeStruct((N, d_model), jnp.float32),
        grid_spec=pltpu.PrefetchScalarGridSpec(
            num_scalar_prefetch=0,
            grid=grid,
            in_specs=[
                # (tile, 4): last dim equals full array dim -> allowed; input bytes are
                # negligible vs the output stream.
                pl.BlockSpec((tile, C), lambda i: (i, 0)),
                # Whole table, constant index_map (fetched once, revisited each step).
                pl.BlockSpec((TABLE_ROWS, d_model), lambda i: (0, 0)),
            ],
            # Last dim == full array dim -> no column padding, no wrapper slice copy.
            out_specs=pl.BlockSpec((tile, d_model), lambda i: (i, 0)),
        ),
        compiler_params=pltpu.CompilerParams(
            dimension_semantics=("parallel",),   # row tiles shard across v7x's 2 TCs
        ),
    )(idx, table)

    # TODO(synk): dropout (p=0.1) is identity here (eval mode); training-mode dropout
    # would use pltpu.prng_seed + pltpu.stateful_bernoulli inside the kernel.
    return out.reshape(B, L, d_model)


def _reference(x_mark, d_model):
    """Pure-JAX reference mirroring the PyTorch forward (eval mode)."""
    month_t = jnp.asarray(_fixed_embedding_table_np(13, d_model))
    day_t = jnp.asarray(_fixed_embedding_table_np(32, d_model))
    wday_t = jnp.asarray(_fixed_embedding_table_np(7, d_model))
    hour_t = jnp.asarray(_fixed_embedding_table_np(24, d_model))
    x = x_mark.astype(jnp.int32)
    return (hour_t[x[:, :, 3]] + wday_t[x[:, :, 2]]
            + day_t[x[:, :, 1]] + month_t[x[:, :, 0]])


if __name__ == "__main__":
    B, L, d_model = 2, 8, 32
    key = jax.random.PRNGKey(0)
    k0, k1, k2, k3 = jax.random.split(key, 4)
    month = jax.random.randint(k0, (B, L), 0, 13)
    day = jax.random.randint(k1, (B, L), 0, 32)
    weekday = jax.random.randint(k2, (B, L), 0, 7)
    hour = jax.random.randint(k3, (B, L), 0, 24)
    x_mark = jnp.stack([month, day, weekday, hour], axis=-1).astype(jnp.int32)

    out = witran_temporal_embedding(x_mark, d_model)
    out = jax.block_until_ready(out)

    ref = _reference(x_mark, d_model)
    np.testing.assert_allclose(np.asarray(out), np.asarray(ref), rtol=1e-5, atol=1e-5)
    print("KERNEL_OK")
</pallas_src>

<mosaic_0001>
module attributes {stable_mosaic.version = 11 : i64} {
  func.func @_temporal_embed_kernel(%arg0: i32, %arg1: memref<16x4xi32, #tpu.memory_space<vmem>>, %arg2: memref<128x32xf32, #tpu.memory_space<vmem>>, %arg3: memref<16x32xf32, #tpu.memory_space<vmem>>) attributes {dimension_semantics = [#tpu.dimension_semantics<parallel>], iteration_bounds = array<i64: 1>, scalar_prefetch = 0 : i64, scratch_operands = 0 : i64, tpu.core_type = #tpu.core_type<tc>, window_params = [{transform_indices = @transform_0, window_bounds = array<i64: 16, 4>}, {pipeline_mode = #tpu.pipeline_mode<synchronous>, transform_indices = @transform_1, window_bounds = array<i64: 128, 32>}, {transform_indices = @transform_2, window_bounds = array<i64: 16, 32>}]} {
    %c0 = arith.constant 0 : index
    %c0_0 = arith.constant 0 : index
    %0 = vector.load %arg1[%c0, %c0_0] : memref<16x4xi32, #tpu.memory_space<vmem>>, vector<16x4xi32>
    %1 = tpu.iota {dimensions = array<i32: 1>} : vector<16x128xi32>
    %2 = vector.extract_strided_slice %0 {offsets = [0, 0], sizes = [16, 1], strides = [1, 1]} : vector<16x4xi32> to vector<16x1xi32>
    %3 = vector.broadcast %2 : vector<16x1xi32> to vector<16x128xi32>
    %4 = arith.cmpi eq, %1, %3 : vector<16x128xi32>
    %5 = vector.extract_strided_slice %0 {offsets = [0, 1], sizes = [16, 1], strides = [1, 1]} : vector<16x4xi32> to vector<16x1xi32>
    %6 = vector.broadcast %5 : vector<16x1xi32> to vector<16x128xi32>
    %7 = arith.cmpi eq, %1, %6 : vector<16x128xi32>
    %8 = arith.ori %4, %7 : vector<16x128xi1>
    %9 = vector.extract_strided_slice %0 {offsets = [0, 2], sizes = [16, 1], strides = [1, 1]} : vector<16x4xi32> to vector<16x1xi32>
    %10 = vector.broadcast %9 : vector<16x1xi32> to vector<16x128xi32>
    %11 = arith.cmpi eq, %1, %10 : vector<16x128xi32>
    %12 = arith.ori %8, %11 : vector<16x128xi1>
    %13 = vector.extract_strided_slice %0 {offsets = [0, 3], sizes = [16, 1], strides = [1, 1]} : vector<16x4xi32> to vector<16x1xi32>
    %14 = vector.broadcast %13 : vector<16x1xi32> to vector<16x128xi32>
    %15 = arith.cmpi eq, %1, %14 : vector<16x128xi32>
    %16 = arith.ori %12, %15 : vector<16x128xi1>
    %17 = arith.extui %16 : vector<16x128xi1> to vector<16x128xi32>
    %18 = arith.sitofp %17 : vector<16x128xi32> to vector<16x128xf32>
    %c0_1 = arith.constant 0 : index
    %c0_2 = arith.constant 0 : index
    %19 = vector.load %arg2[%c0_1, %c0_2] : memref<128x32xf32, #tpu.memory_space<vmem>>, vector<128x32xf32>
    %cst = arith.constant dense<0.000000e+00> : vector<16x32xf32>
    %20 = tpu.matmul %18, %19, %cst {dimension_numbers = #tpu.dot_dimension_numbers<[1], [0], [0], [1], [0, 0, 1, 1], [], []>} : vector<16x128xf32>, vector<128x32xf32>, vector<16x32xf32> -> vector<16x32xf32>
    %c0_3 = arith.constant 0 : index
    %c0_4 = arith.constant 0 : index
    %21 = vector.load %arg3[%c0_3, %c0_4] : memref<16x32xf32, #tpu.memory_space<vmem>>, vector<16x32xf32>
    tpu.vector_store %arg3[%c0_3, %c0_4], %20 {strides = array<i32>} : memref<16x32xf32, #tpu.memory_space<vmem>>, vector<16x32xf32>,
    return
  }
  func.func @transform_0(%arg0: i32) -> (i32, i32) {
    %c0_i32 = arith.constant 0 : i32
    %c0_i32_0 = arith.constant 0 : i32
    return %arg0, %c0_i32 : i32, i32
  }
  func.func @transform_1(%arg0: i32) -> (i32, i32) {
    %c0_i32 = arith.constant 0 : i32
    %c0_i32_0 = arith.constant 0 : i32
    %c0_i32_1 = arith.constant 0 : i32
    return %c0_i32, %c0_i32_0 : i32, i32
  }
  func.func @transform_2(%arg0: i32) -> (i32, i32) {
    %c0_i32 = arith.constant 0 : i32
    %c0_i32_0 = arith.constant 0 : i32
    return %arg0, %c0_i32 : i32, i32
  }
}

</mosaic_0001>

<llo_original>
// kernel: tpu_custom_call.1
$region0: #{tpu_custom_call.1}
  #allocation0 [shape = 'u32[]', space=smem, size = 0x4, offset = 0x4, fixed_abs, tag = 'smem constant byte address 0x4 - core index']
  #allocation1 [shape = 'u32[72,128]{1,0:T(1,128)}', space=vmem, size = 0x9000, scoped, tag = 'internal scratch']
  %s0 = inlined_call_operand.vmem [shape: s32[16,4], index: 0, kind: input, shape index: {}]
  %s1 = inlined_call_operand.vmem [shape: f32[128,32], index: 1, kind: input, shape index: {}]
  %s2 = inlined_call_operand.hbm [shape: f32[16,32], index: 2, kind: output, shape index: {}]
  %s3 = sld [smem:[#allocation0]]
  $region18: #{tpu_custom_call.1} parent=0
    _
  %s5 = ssub.s32 1, %s3
  %s6 = scalar_select 0, %s5, %s3
  $region1: #{tpu_custom_call.1} parent=0
    #allocation2 [shape = 'u8[8192]{0}', space=vmem, size = 0x2000, scoped, tag = 'output window, operand 0, single buffered']
    #allocation3 [shape = 's32[1]{0}', space=sflag, size = 0x4, scoped, tag = 'scoped memory for tpu_custom_call.1']
    %7 = vsyncpa [#allocation3], 0
    // Predicated region
    $region2: #{tpu_custom_call.1} parent=1 // pred_check
      _
    $region3: #{tpu_custom_call.1} parent=1 // pred_check_branch
      %9 = sbr.rel (0) target = $region5
    $region4: #{tpu_custom_call.1} parent=1 // pred_region
      _
    $region5: #{tpu_custom_call.1} parent=1 // pred_fallthru
      _
    // Predicated region
    $region6: #{tpu_custom_call.1} parent=1 // pred_check
      _
    $region7: #{tpu_custom_call.1} parent=1 // pred_check_branch
      %11 = sbr.rel (0) target = $region9
    $region8: #{tpu_custom_call.1} parent=1 // pred_region
      _
    $region9: #{tpu_custom_call.1} parent=1 // pred_fallthru
      _
    %v12 = vld [vmem:[%s0] sm:$0xff]
    %v13 = vld [vmem:[%s0 + $0x8] sm:$0xff]
    %v14 = vlaneseq
    %v15 = vand.u32 %v14, 127
    %16 = vset.pattern.permute.xlu0 0
    %17 = vperm.xlu0 %16, %v12
    %v18 = vpop.permute.xlu0 %17
    %19 = vset.pattern.permute.xlu0 0
    %20 = vperm.xlu0 %19, %v13
    %v21 = vpop.permute.xlu0 %20
    %vm22 = vcmp.eq.s32.totalorder %v15, %v18
    %vm23 = vcmp.eq.s32.totalorder %v15, %v21
    %24 = vset.pattern.permute.xlu0 1
    %25 = vperm.xlu0 %24, %v12
    %v26 = vpop.permute.xlu0 %25
    %27 = vset.pattern.permute.xlu0 1
    %28 = vperm.xlu0 %27, %v13
    %v29 = vpop.permute.xlu0 %28
    %vm30 = vcmp.eq.s32.totalorder %v15, %v26
    %vm31 = vcmp.eq.s32.totalorder %v15, %v29
    %vm32 = vmor %vm22, %vm30
    %vm33 = vmor %vm23, %vm31
    %34 = vset.pattern.permute.xlu0 2
    %35 = vperm.xlu0 %34, %v12
    %v36 = vpop.permute.xlu0 %35
    %37 = vset.pattern.permute.xlu0 2
    %38 = vperm.xlu0 %37, %v13
    %v39 = vpop.permute.xlu0 %38
    %vm40 = vcmp.eq.s32.totalorder %v15, %v36
    %vm41 = vcmp.eq.s32.totalorder %v15, %v39
    %vm42 = vmor %vm32, %vm40
    %vm43 = vmor %vm33, %vm41
    %44 = vset.pattern.permute.xlu0 3
    %45 = vperm.xlu0 %44, %v12
    %v46 = vpop.permute.xlu0 %45
    %47 = vset.pattern.permute.xlu0 3
    %48 = vperm.xlu0 %47, %v13
    %v49 = vpop.permute.xlu0 %48
    %vm50 = vcmp.eq.s32.totalorder %v15, %v46
    %vm51 = vcmp.eq.s32.totalorder %v15, %v49
    %vm52 = vmor %vm42, %vm50
    %vm53 = vmor %vm43, %vm51
    %v54 = vsel %vm52, 1, 0
    %v55 = vsel %vm53, 1, 0
    %v56 = vcvt.s32.f32 %v54
    %v57 = vcvt.s32.f32 %v55
    %v58 = vld [vmem:[%s1] sm:$0xff]
    %v59 = vld [vmem:[%s1 + $0x8] sm:$0xff]
    %v60 = vld [vmem:[%s1 + $0x10] sm:$0xff]
    %v61 = vld [vmem:[%s1 + $0x18] sm:$0xff]
    %v62 = vld [vmem:[%s1 + $0x20] sm:$0xff]
    %v63 = vld [vmem:[%s1 + $0x28] sm:$0xff]
    %v64 = vld [vmem:[%s1 + $0x30] sm:$0xff]
    %v65 = vld [vmem:[%s1 + $0x38] sm:$0xff]
    %v66 = vld [vmem:[%s1 + $0x40] sm:$0xff]
    %v67 = vld [vmem:[%s1 + $0x48] sm:$0xff]
    %v68 = vld [vmem:[%s1 + $0x50] sm:$0xff]
    %v69 = vld [vmem:[%s1 + $0x58] sm:$0xff]
    %v70 = vld [vmem:[%s1 + $0x60] sm:$0xff]
    %v71 = vld [vmem:[%s1 + $0x68] sm:$0xff]
    %v72 = vld [vmem:[%s1 + $0x70] sm:$0xff]
    %v73 = vld [vmem:[%s1 + $0x78] sm:$0xff]
    %74 = vmatpush.msra.mxu0 %v73
    %75 = vmatpush.msra.mxu0 %v72
    %76 = vmatpush.msra.mxu0 %v71
    %77 = vmatpush.msra.mxu0 %v70
    %78 = vmatpush.msra.mxu0 %v69
    %79 = vmatpush.msra.mxu0 %v68
    %80 = vmatpush.msra.mxu0 %v67
    %81 = vmatpush.msra.mxu0 %v66
    %82 = vmatpush.msra.mxu0 %v65
    %83 = vmatpush.msra.mxu0 %v64
    %84 = vmatpush.msra.mxu0 %v63
    %85 = vmatpush.msra.mxu0 %v62
    %86 = vmatpush.msra.mxu0 %v61
    %87 = vmatpush.msra.mxu0 %v60
    %88 = vmatpush.msra.mxu0 %v59
    %89 = vmatpush.msra.mxu0 %v58
    %90 = vmatmul.f32.gmra.mxu0 %v56
    %v91 = vpop.f32.mrf.mxu0
    %v92 = vadd.f32 0.0, %v91
    %93 = vmatmul.f32.gmra.mxu0 %v57
    %v94 = vpop.f32.mrf.mxu0
    %v95 = vadd.f32 0.0, %v94
    %96 = vdwg.mxu0
    %vm97 = vcmask 261120
    %98 = vst.msk [vmem:[#allocation2] sm:$0xff] %vm97, %v92
    %99 = vst.msk [vmem:[#allocation2 + $0x8] sm:$0xff] %vm97, %v95
    // Predicated region
    $region10: #{tpu_custom_call.1} parent=1 // pred_check
      _
    $region11: #{tpu_custom_call.1} parent=1 // pred_check_branch
      %101 = sbr.rel (0) target = $region13
    $region12: #{tpu_custom_call.1} parent=1 // pred_region
      %103 = vsyncadd [#allocation3], 0
      %s104 = sshll.u32 [#allocation2], 4
      %s105 = int_to_ptr.vmem [resolvable:$true] %s104
      %s106 = sshll.u32 %s2, 4
      %s107 = int_to_ptr.hbm [resolvable:$true] %s106
      %112 = dma.vmem_to_hbm [thread:$0]  %s105, 256, %s107, [#allocation3], 128, 128, 8
    $region13: #{tpu_custom_call.1} parent=1 // pred_fallthru
      _
    // Predicated region
    $region14: #{tpu_custom_call.1} parent=1 // pred_check
      _
    $region15: #{tpu_custom_call.1} parent=1 // pred_check_branch
      %114 = sbr.rel (0) target = $region17
    $region16: #{tpu_custom_call.1} parent=1 // pred_region
      %116 = dma.done [#allocation3], 256
    $region17: #{tpu_custom_call.1} parent=1 // pred_fallthru
      _
    %117 = vsyncpa [#allocation3], 1

</llo_original>
